<compile_context>
chip_gen: v6e
topology: v6e:2x2x1
jax: 0.10.0
libtpu: 0.0.40
codegen_flags: <defaults>
</compile_context>

<pallas_src>
import math
import functools

import numpy as np
import jax
import jax.numpy as jnp
from jax.experimental import pallas as pl
from jax.experimental.pallas import tpu as pltpu


# ------------------------------ Pallas kernel ------------------------------

def ghost_kernel(x_ref, w1_ref, c_ref, m_ref, o_ref, *, W, B, Cin, Cmid, Cnew, oup):
    # x_ref : (1, B*Cin, HW)   B images, NCHW with H*W flattened on lanes
    # w1_ref: (B*Cmid, B*Cin)  block-diagonal 1x1 conv weight (BN scale folded)
    # c_ref : (B*Cmid, 11)     per-channel constants: [b1 | 9 dw taps | b2]
    # m_ref : (2, HW)          row0: col 0 zeroed, row1: col W-1 zeroed
    # o_ref : (1, B*oup, HW)   fused output, per image [x1 ; x2[:oup-Cmid]]
    HW = x_ref.shape[2]
    BCin = B * Cin

    x = x_ref[0]                            # (B*Cin, HW)
    w1 = w1_ref[...]                        # (B*Cmid, B*Cin)
    b1 = c_ref[:, 0:1]                      # (B*Cmid, 1)
    wdw = c_ref[:, 1:10]                    # (B*Cmid, 9), tap t = (dy+1)*3+(dx+1)
    b2 = c_ref[:, 10:11]                    # (B*Cmid, 1)

    # ---- primary 1x1 conv + (folded) BN + ReLU, accumulated in registers ----
    if Cin >= 128:
        # big layers: per-image bf16 MXU matmul with f32 accumulation
        parts = []
        for b in range(B):
            wb = w1[b * Cmid:(b + 1) * Cmid, b * Cin:(b + 1) * Cin]
            xb = x[b * Cin:(b + 1) * Cin, :]
            parts.append(jnp.dot(wb.astype(jnp.bfloat16), xb.astype(jnp.bfloat16),
                                 preferred_element_type=jnp.float32))
        acc1 = parts[0] if B == 1 else jnp.concatenate(parts, axis=0)
    else:
        # tiny channel counts: B*Cin VPU broadcast-FMAs on the (B*Cmid, HW) tile
        acc1 = w1[:, 0:1] * x[0:1, :]
        for j in range(1, BCin):
            acc1 = acc1 + w1[:, j:j + 1] * x[j:j + 1, :]
    x1 = jnp.maximum(acc1 + b1, 0.0)        # (B*Cmid, HW)

    # ---- cheap op: 3x3 depthwise conv + (folded) BN + ReLU, all in vregs ----
    xl = x1 * m_ref[1:2, :]                 # col W-1 zeroed: sources of dx = -1 taps
    xr = x1 * m_ref[0:1, :]                 # col 0   zeroed: sources of dx = +1 taps

    def tap(src, s):
        # out[p] = src[(p + s) mod HW]; the cyclic wrap is cancelled by the
        # row-validity masks / column masks.
        sh = (-s) % HW
        return pltpu.roll(src, sh, axis=1) if sh else src

    # Vertical-tap validity (wrap of the roll): output row 0 gets no dy=-1
    # taps, the last output row gets no dy=+1 taps.
    lane = jax.lax.broadcasted_iota(jnp.int32, (1, HW), 1)
    top_ok = (lane >= W).astype(jnp.float32)
    bot_ok = (lane < HW - W).astype(jnp.float32)

    mid = (wdw[:, 3:4] * tap(xl, -1) + wdw[:, 4:5] * x1
           + wdw[:, 5:6] * tap(xr, 1))
    up = (wdw[:, 0:1] * tap(xl, -W - 1) + wdw[:, 1:2] * tap(x1, -W)
          + wdw[:, 2:3] * tap(xr, -W + 1))
    dn = (wdw[:, 6:7] * tap(xl, W - 1) + wdw[:, 7:8] * tap(x1, W)
          + wdw[:, 8:9] * tap(xr, W + 1))
    x2 = jnp.maximum(mid + top_ok * up + bot_ok * dn + b2, 0.0)   # (B*Cnew, HW)

    # ---- cat([x1, x2], dim=1)[:, :oup] assembled in registers, one store ----
    pieces = []
    for b in range(B):
        pieces.append(x1[b * Cmid:(b + 1) * Cmid, :])
        pieces.append(x2[b * Cnew:b * Cnew + (oup - Cmid), :])
    out = jnp.concatenate(pieces, axis=0)                          # (B*oup, HW)
    o_ref[0] = out.astype(o_ref.dtype)


# ------------------------------ JAX wrapper --------------------------------

def ghost_module_forward(x_nchw, params, oup):
    """GhostModule forward (ratio=2, relu=True). x_nchw: (N, Cin, H, W) f32."""
    w1, s1, b1, wdw, s2, b2 = params
    N, Cin, H, W = x_nchw.shape
    Cmid = w1.shape[0]                 # init_channels
    Cnew = wdw.shape[0]                # new_channels
    assert Cnew == Cmid, "only the ratio=2 GhostModule path is implemented"
    HW = H * W

    # Pack B images per grid step so B*Cmid fills the 8 vreg sublanes.
    B = math.gcd(N, max(1, 8 // Cmid))
    G = N // B

    # Fold BN scales into the conv weights at trace time; keep only the bias.
    w1_eff = (w1 * s1[:, None]).astype(jnp.float32)               # (Cmid, Cin)
    wdw_eff = (wdw * s2[:, None, None]).reshape(Cnew, 9).astype(jnp.float32)

    # Block-diagonal 1x1 weight handles all B packed images in one FMA sweep.
    w1_bd = jnp.kron(jnp.eye(B, dtype=jnp.float32), w1_eff)       # (B*Cmid, B*Cin)

    # Single lane-packed constants operand: [b1 | 9 dw taps | b2] per row.
    cconst = jnp.concatenate(
        [jnp.tile(b1.reshape(Cmid, 1).astype(jnp.float32), (B, 1)),
         jnp.tile(wdw_eff, (B, 1)),
         jnp.tile(b2.reshape(Cnew, 1).astype(jnp.float32), (B, 1))],
        axis=1)                                                   # (B*Cmid, 11)

    # Trace-time column masks for the horizontal taps of the flattened layout.
    m = np.ones((2, HW), np.float32)
    m[0, 0::W] = 0.0          # zero column 0    (sources of dx = +1 taps)
    m[1, W - 1::W] = 0.0      # zero column W-1  (sources of dx = -1 taps)
    col_mask = jnp.asarray(m)

    # NCHW kept end-to-end; both reshapes are free contiguous views.
    x_flat = x_nchw.reshape(G, B * Cin, HW)

    out_flat = pl.pallas_call(
        functools.partial(ghost_kernel, W=W, B=B, Cin=Cin, Cmid=Cmid,
                          Cnew=Cnew, oup=oup),
        out_shape=jax.ShapeDtypeStruct((G, B * oup, HW), jnp.float32),
        grid=(G,),                                # B images per grid step
        in_specs=[
            pl.BlockSpec((1, B * Cin, HW), lambda g: (g, 0, 0)),
            pl.BlockSpec((B * Cmid, B * Cin), lambda g: (0, 0)),
            pl.BlockSpec((B * Cmid, 11), lambda g: (0, 0)),
            pl.BlockSpec((2, HW), lambda g: (0, 0)),
        ],
        out_specs=pl.BlockSpec((1, B * oup, HW), lambda g: (g, 0, 0)),
        compiler_params=pltpu.CompilerParams(dimension_semantics=("parallel",)),
    )(x_flat, w1_bd, cconst, col_mask)

    return out_flat.reshape(N, oup, H, W)


# --------------------------- parameter creation -----------------------------

def make_params(key, inp, oup, ratio=2, dw_size=3, eps=1e-5):
    init_channels = math.ceil(oup / ratio)
    new_channels = init_channels * (ratio - 1)
    k1, k2, k3, k4, k5, k6 = jax.random.split(key, 6)
    # primary conv weight: PyTorch (init, inp, 1, 1) -> (init, inp)
    w1 = jax.random.normal(k1, (init_channels, inp), jnp.float32) * 0.1
    # depthwise conv weight: PyTorch (new, 1, 3, 3) -> (new, 3, 3)
    wdw = jax.random.normal(k2, (new_channels, dw_size, dw_size), jnp.float32) * 0.1
    # BatchNorm (eval mode, running_mean=0, running_var=1) -> scale/bias
    g1 = 1.0 + 0.1 * jax.random.normal(k3, (init_channels,), jnp.float32)
    b1 = 0.1 * jax.random.normal(k4, (init_channels,), jnp.float32)
    g2 = 1.0 + 0.1 * jax.random.normal(k5, (new_channels,), jnp.float32)
    b2 = 0.1 * jax.random.normal(k6, (new_channels,), jnp.float32)
    s1 = g1 / jnp.sqrt(1.0 + eps)
    s2 = g2 / jnp.sqrt(1.0 + eps)
    return (w1, s1, b1, wdw, s2, b2)


# -------------------------------- reference ---------------------------------

def reference_forward(x_nchw, params, oup):
    w1, s1, b1, wdw, s2, b2 = params
    Cmid = w1.shape[0]
    Cnew = wdw.shape[0]
    x = jnp.transpose(x_nchw, (0, 2, 3, 1))                       # NHWC
    dn = ("NHWC", "HWIO", "NHWC")
    w1_hwio = jnp.transpose(w1, (1, 0)).reshape(1, 1, w1.shape[1], Cmid)
    y1 = jax.lax.conv_general_dilated(x, w1_hwio, (1, 1), "SAME",
                                      dimension_numbers=dn)
    x1 = jnp.maximum(y1 * s1 + b1, 0.0)
    wdw_hwio = jnp.transpose(wdw, (1, 2, 0))[:, :, None, :]       # (3,3,1,Cnew)
    y2 = jax.lax.conv_general_dilated(x1, wdw_hwio, (1, 1), "SAME",
                                      dimension_numbers=dn,
                                      feature_group_count=Cmid)
    x2 = jnp.maximum(y2 * s2 + b2, 0.0)
    out = jnp.concatenate([x1, x2], axis=-1)[..., :oup]
    return jnp.transpose(out, (0, 3, 1, 2))


# ----------------------------------- main ------------------------------------

if __name__ == "__main__":
    inp, oup = 4, 8            # ratio=2 -> init_channels=4, new_channels=4
    N, H, W = 2, 16, 16

    key = jax.random.PRNGKey(0)
    kx, kp = jax.random.split(key)
    x = jax.random.normal(kx, (N, inp, H, W), jnp.float32)
    params = make_params(kp, inp, oup)

    out = jax.block_until_ready(ghost_module_forward(x, params, oup))
    ref = jax.block_until_ready(reference_forward(x, params, oup))

    assert out.shape == (N, oup, H, W), out.shape
    assert jnp.allclose(out, ref, atol=1e-5, rtol=1e-5), float(jnp.abs(out - ref).max())

    print("KERNEL_OK")
</pallas_src>

<mosaic_0001>
module attributes {stable_mosaic.version = 11 : i64} {
  func.func @ghost_kernel(%arg0: i32, %arg1: memref<1x8x256xf32, #tpu.memory_space<vmem>>, %arg2: memref<8x8xf32, #tpu.memory_space<vmem>>, %arg3: memref<8x11xf32, #tpu.memory_space<vmem>>, %arg4: memref<2x256xf32, #tpu.memory_space<vmem>>, %arg5: memref<1x16x256xf32, #tpu.memory_space<vmem>>) attributes {dimension_semantics = [#tpu.dimension_semantics<parallel>], iteration_bounds = array<i64: 1>, scalar_prefetch = 0 : i64, scratch_operands = 0 : i64, tpu.core_type = #tpu.core_type<tc>, window_params = [{transform_indices = @transform_0, window_bounds = array<i64: 1, 8, 256>}, {pipeline_mode = #tpu.pipeline_mode<synchronous>, transform_indices = @transform_1, window_bounds = array<i64: 8, 8>}, {pipeline_mode = #tpu.pipeline_mode<synchronous>, transform_indices = @transform_2, window_bounds = array<i64: 8, 11>}, {pipeline_mode = #tpu.pipeline_mode<synchronous>, transform_indices = @transform_3, window_bounds = array<i64: 2, 256>}, {transform_indices = @transform_4, window_bounds = array<i64: 1, 16, 256>}]} {
    %c0 = arith.constant 0 : index
    %c0_0 = arith.constant 0 : index
    %c0_1 = arith.constant 0 : index
    %0 = vector.load %arg1[%c0, %c0_0, %c0_1] : memref<1x8x256xf32, #tpu.memory_space<vmem>>, vector<1x8x256xf32>
    %1 = vector.shape_cast %0 : vector<1x8x256xf32> to vector<8x256xf32>
    %c0_2 = arith.constant 0 : index
    %c0_3 = arith.constant 0 : index
    %2 = vector.load %arg2[%c0_2, %c0_3] : memref<8x8xf32, #tpu.memory_space<vmem>>, vector<8x8xf32>
    %c0_4 = arith.constant 0 : index
    %c0_5 = arith.constant 0 : index
    %3 = vector.load %arg3[%c0_4, %c0_5] : memref<8x11xf32, #tpu.memory_space<vmem>>, vector<8x1xf32>
    %c0_6 = arith.constant 0 : index
    %c1 = arith.constant 1 : index
    %4 = vector.load %arg3[%c0_6, %c1] : memref<8x11xf32, #tpu.memory_space<vmem>>, vector<8x9xf32>
    %c0_7 = arith.constant 0 : index
    %c10 = arith.constant 10 : index
    %5 = vector.load %arg3[%c0_7, %c10] : memref<8x11xf32, #tpu.memory_space<vmem>>, vector<8x1xf32>
    %6 = vector.extract_strided_slice %2 {offsets = [0, 0], sizes = [8, 1], strides = [1, 1]} : vector<8x8xf32> to vector<8x1xf32>
    %7 = vector.extract_strided_slice %1 {offsets = [0, 0], sizes = [1, 256], strides = [1, 1]} : vector<8x256xf32> to vector<1x256xf32>
    %8 = vector.broadcast %6 : vector<8x1xf32> to vector<8x256xf32>
    %9 = vector.broadcast %7 : vector<1x256xf32> to vector<8x256xf32>
    %10 = arith.mulf %8, %9 : vector<8x256xf32>
    %11 = vector.extract_strided_slice %2 {offsets = [0, 1], sizes = [8, 1], strides = [1, 1]} : vector<8x8xf32> to vector<8x1xf32>
    %12 = vector.extract_strided_slice %1 {offsets = [1, 0], sizes = [1, 256], strides = [1, 1]} : vector<8x256xf32> to vector<1x256xf32>
    %13 = vector.broadcast %11 : vector<8x1xf32> to vector<8x256xf32>
    %14 = vector.broadcast %12 : vector<1x256xf32> to vector<8x256xf32>
    %15 = arith.mulf %13, %14 : vector<8x256xf32>
    %16 = arith.addf %10, %15 : vector<8x256xf32>
    %17 = vector.extract_strided_slice %2 {offsets = [0, 2], sizes = [8, 1], strides = [1, 1]} : vector<8x8xf32> to vector<8x1xf32>
    %18 = vector.extract_strided_slice %1 {offsets = [2, 0], sizes = [1, 256], strides = [1, 1]} : vector<8x256xf32> to vector<1x256xf32>
    %19 = vector.broadcast %17 : vector<8x1xf32> to vector<8x256xf32>
    %20 = vector.broadcast %18 : vector<1x256xf32> to vector<8x256xf32>
    %21 = arith.mulf %19, %20 : vector<8x256xf32>
    %22 = arith.addf %16, %21 : vector<8x256xf32>
    %23 = vector.extract_strided_slice %2 {offsets = [0, 3], sizes = [8, 1], strides = [1, 1]} : vector<8x8xf32> to vector<8x1xf32>
    %24 = vector.extract_strided_slice %1 {offsets = [3, 0], sizes = [1, 256], strides = [1, 1]} : vector<8x256xf32> to vector<1x256xf32>
    %25 = vector.broadcast %23 : vector<8x1xf32> to vector<8x256xf32>
    %26 = vector.broadcast %24 : vector<1x256xf32> to vector<8x256xf32>
    %27 = arith.mulf %25, %26 : vector<8x256xf32>
    %28 = arith.addf %22, %27 : vector<8x256xf32>
    %29 = vector.extract_strided_slice %2 {offsets = [0, 4], sizes = [8, 1], strides = [1, 1]} : vector<8x8xf32> to vector<8x1xf32>
    %30 = vector.extract_strided_slice %1 {offsets = [4, 0], sizes = [1, 256], strides = [1, 1]} : vector<8x256xf32> to vector<1x256xf32>
    %31 = vector.broadcast %29 : vector<8x1xf32> to vector<8x256xf32>
    %32 = vector.broadcast %30 : vector<1x256xf32> to vector<8x256xf32>
    %33 = arith.mulf %31, %32 : vector<8x256xf32>
    %34 = arith.addf %28, %33 : vector<8x256xf32>
    %35 = vector.extract_strided_slice %2 {offsets = [0, 5], sizes = [8, 1], strides = [1, 1]} : vector<8x8xf32> to vector<8x1xf32>
    %36 = vector.extract_strided_slice %1 {offsets = [5, 0], sizes = [1, 256], strides = [1, 1]} : vector<8x256xf32> to vector<1x256xf32>
    %37 = vector.broadcast %35 : vector<8x1xf32> to vector<8x256xf32>
    %38 = vector.broadcast %36 : vector<1x256xf32> to vector<8x256xf32>
    %39 = arith.mulf %37, %38 : vector<8x256xf32>
    %40 = arith.addf %34, %39 : vector<8x256xf32>
    %41 = vector.extract_strided_slice %2 {offsets = [0, 6], sizes = [8, 1], strides = [1, 1]} : vector<8x8xf32> to vector<8x1xf32>
    %42 = vector.extract_strided_slice %1 {offsets = [6, 0], sizes = [1, 256], strides = [1, 1]} : vector<8x256xf32> to vector<1x256xf32>
    %43 = vector.broadcast %41 : vector<8x1xf32> to vector<8x256xf32>
    %44 = vector.broadcast %42 : vector<1x256xf32> to vector<8x256xf32>
    %45 = arith.mulf %43, %44 : vector<8x256xf32>
    %46 = arith.addf %40, %45 : vector<8x256xf32>
    %47 = vector.extract_strided_slice %2 {offsets = [0, 7], sizes = [8, 1], strides = [1, 1]} : vector<8x8xf32> to vector<8x1xf32>
    %48 = vector.extract_strided_slice %1 {offsets = [7, 0], sizes = [1, 256], strides = [1, 1]} : vector<8x256xf32> to vector<1x256xf32>
    %49 = vector.broadcast %47 : vector<8x1xf32> to vector<8x256xf32>
    %50 = vector.broadcast %48 : vector<1x256xf32> to vector<8x256xf32>
    %51 = arith.mulf %49, %50 : vector<8x256xf32>
    %52 = arith.addf %46, %51 : vector<8x256xf32>
    %53 = vector.broadcast %3 : vector<8x1xf32> to vector<8x256xf32>
    %54 = arith.addf %52, %53 : vector<8x256xf32>
    %cst = arith.constant 0.000000e+00 : f32
    %55 = vector.broadcast %cst : f32 to vector<8x256xf32>
    %56 = arith.maximumf %54, %55 : vector<8x256xf32>
    %c1_8 = arith.constant 1 : index
    %c0_9 = arith.constant 0 : index
    %57 = vector.load %arg4[%c1_8, %c0_9] : memref<2x256xf32, #tpu.memory_space<vmem>>, vector<1x256xf32>
    %58 = vector.broadcast %57 : vector<1x256xf32> to vector<8x256xf32>
    %59 = arith.mulf %56, %58 : vector<8x256xf32>
    %c0_10 = arith.constant 0 : index
    %c0_11 = arith.constant 0 : index
    %60 = vector.load %arg4[%c0_10, %c0_11] : memref<2x256xf32, #tpu.memory_space<vmem>>, vector<1x256xf32>
    %61 = vector.broadcast %60 : vector<1x256xf32> to vector<8x256xf32>
    %62 = arith.mulf %56, %61 : vector<8x256xf32>
    %63 = tpu.iota {dimensions = array<i32: 1>} : vector<1x256xi32>
    %c16_i32 = arith.constant 16 : i32
    %64 = vector.broadcast %c16_i32 : i32 to vector<1x256xi32>
    %65 = arith.cmpi sge, %63, %64 : vector<1x256xi32>
    %66 = arith.extui %65 : vector<1x256xi1> to vector<1x256xi32>
    %67 = arith.sitofp %66 : vector<1x256xi32> to vector<1x256xf32>
    %c240_i32 = arith.constant 240 : i32
    %68 = vector.broadcast %c240_i32 : i32 to vector<1x256xi32>
    %69 = arith.cmpi slt, %63, %68 : vector<1x256xi32>
    %70 = arith.extui %69 : vector<1x256xi1> to vector<1x256xi32>
    %71 = arith.sitofp %70 : vector<1x256xi32> to vector<1x256xf32>
    %72 = vector.extract_strided_slice %4 {offsets = [0, 3], sizes = [8, 1], strides = [1, 1]} : vector<8x9xf32> to vector<8x1xf32>
    %c1_i32 = arith.constant 1 : i32
    %73 = tpu.dynamic_rotate %59 by %c1_i32 dim 1 : vector<8x256xf32>, i32 -> vector<8x256xf32>
    %74 = vector.broadcast %72 : vector<8x1xf32> to vector<8x256xf32>
    %75 = arith.mulf %74, %73 : vector<8x256xf32>
    %76 = vector.extract_strided_slice %4 {offsets = [0, 4], sizes = [8, 1], strides = [1, 1]} : vector<8x9xf32> to vector<8x1xf32>
    %77 = vector.broadcast %76 : vector<8x1xf32> to vector<8x256xf32>
    %78 = arith.mulf %77, %56 : vector<8x256xf32>
    %79 = arith.addf %75, %78 : vector<8x256xf32>
    %80 = vector.extract_strided_slice %4 {offsets = [0, 5], sizes = [8, 1], strides = [1, 1]} : vector<8x9xf32> to vector<8x1xf32>
    %c255_i32 = arith.constant 255 : i32
    %81 = tpu.dynamic_rotate %62 by %c255_i32 dim 1 : vector<8x256xf32>, i32 -> vector<8x256xf32>
    %82 = vector.broadcast %80 : vector<8x1xf32> to vector<8x256xf32>
    %83 = arith.mulf %82, %81 : vector<8x256xf32>
    %84 = arith.addf %79, %83 : vector<8x256xf32>
    %85 = vector.extract_strided_slice %4 {offsets = [0, 0], sizes = [8, 1], strides = [1, 1]} : vector<8x9xf32> to vector<8x1xf32>
    %c17_i32 = arith.constant 17 : i32
    %86 = tpu.dynamic_rotate %59 by %c17_i32 dim 1 : vector<8x256xf32>, i32 -> vector<8x256xf32>
    %87 = vector.broadcast %85 : vector<8x1xf32> to vector<8x256xf32>
    %88 = arith.mulf %87, %86 : vector<8x256xf32>
    %89 = vector.extract_strided_slice %4 {offsets = [0, 1], sizes = [8, 1], strides = [1, 1]} : vector<8x9xf32> to vector<8x1xf32>
    %c16_i32_12 = arith.constant 16 : i32
    %90 = tpu.dynamic_rotate %56 by %c16_i32_12 dim 1 : vector<8x256xf32>, i32 -> vector<8x256xf32>
    %91 = vector.broadcast %89 : vector<8x1xf32> to vector<8x256xf32>
    %92 = arith.mulf %91, %90 : vector<8x256xf32>
    %93 = arith.addf %88, %92 : vector<8x256xf32>
    %94 = vector.extract_strided_slice %4 {offsets = [0, 2], sizes = [8, 1], strides = [1, 1]} : vector<8x9xf32> to vector<8x1xf32>
    %c15_i32 = arith.constant 15 : i32
    %95 = tpu.dynamic_rotate %62 by %c15_i32 dim 1 : vector<8x256xf32>, i32 -> vector<8x256xf32>
    %96 = vector.broadcast %94 : vector<8x1xf32> to vector<8x256xf32>
    %97 = arith.mulf %96, %95 : vector<8x256xf32>
    %98 = arith.addf %93, %97 : vector<8x256xf32>
    %99 = vector.extract_strided_slice %4 {offsets = [0, 6], sizes = [8, 1], strides = [1, 1]} : vector<8x9xf32> to vector<8x1xf32>
    %c241_i32 = arith.constant 241 : i32
    %100 = tpu.dynamic_rotate %59 by %c241_i32 dim 1 : vector<8x256xf32>, i32 -> vector<8x256xf32>
    %101 = vector.broadcast %99 : vector<8x1xf32> to vector<8x256xf32>
    %102 = arith.mulf %101, %100 : vector<8x256xf32>
    %103 = vector.extract_strided_slice %4 {offsets = [0, 7], sizes = [8, 1], strides = [1, 1]} : vector<8x9xf32> to vector<8x1xf32>
    %c240_i32_13 = arith.constant 240 : i32
    %104 = tpu.dynamic_rotate %56 by %c240_i32_13 dim 1 : vector<8x256xf32>, i32 -> vector<8x256xf32>
    %105 = vector.broadcast %103 : vector<8x1xf32> to vector<8x256xf32>
    %106 = arith.mulf %105, %104 : vector<8x256xf32>
    %107 = arith.addf %102, %106 : vector<8x256xf32>
    %108 = vector.extract_strided_slice %4 {offsets = [0, 8], sizes = [8, 1], strides = [1, 1]} : vector<8x9xf32> to vector<8x1xf32>
    %c239_i32 = arith.constant 239 : i32
    %109 = tpu.dynamic_rotate %62 by %c239_i32 dim 1 : vector<8x256xf32>, i32 -> vector<8x256xf32>
    %110 = vector.broadcast %108 : vector<8x1xf32> to vector<8x256xf32>
    %111 = arith.mulf %110, %109 : vector<8x256xf32>
    %112 = arith.addf %107, %111 : vector<8x256xf32>
    %113 = vector.broadcast %67 : vector<1x256xf32> to vector<8x256xf32>
    %114 = arith.mulf %113, %98 : vector<8x256xf32>
    %115 = arith.addf %84, %114 : vector<8x256xf32>
    %116 = vector.broadcast %71 : vector<1x256xf32> to vector<8x256xf32>
    %117 = arith.mulf %116, %112 : vector<8x256xf32>
    %118 = arith.addf %115, %117 : vector<8x256xf32>
    %119 = vector.broadcast %5 : vector<8x1xf32> to vector<8x256xf32>
    %120 = arith.addf %118, %119 : vector<8x256xf32>
    %cst_14 = arith.constant 0.000000e+00 : f32
    %121 = vector.broadcast %cst_14 : f32 to vector<8x256xf32>
    %122 = arith.maximumf %120, %121 : vector<8x256xf32>
    %123 = vector.extract_strided_slice %56 {offsets = [0, 0], sizes = [4, 256], strides = [1, 1]} : vector<8x256xf32> to vector<4x256xf32>
    %124 = vector.extract_strided_slice %122 {offsets = [0, 0], sizes = [4, 256], strides = [1, 1]} : vector<8x256xf32> to vector<4x256xf32>
    %125 = vector.extract_strided_slice %56 {offsets = [4, 0], sizes = [4, 256], strides = [1, 1]} : vector<8x256xf32> to vector<4x256xf32>
    %126 = vector.extract_strided_slice %122 {offsets = [4, 0], sizes = [4, 256], strides = [1, 1]} : vector<8x256xf32> to vector<4x256xf32>
    %127 = tpu.concatenate %123, %124, %125, %126 in 0 : vector<4x256xf32>, vector<4x256xf32>, vector<4x256xf32>, vector<4x256xf32> -> vector<16x256xf32>
    %c0_15 = arith.constant 0 : index
    %c0_16 = arith.constant 0 : index
    %c0_17 = arith.constant 0 : index
    %128 = vector.load %arg5[%c0_15, %c0_16, %c0_17] : memref<1x16x256xf32, #tpu.memory_space<vmem>>, vector<1x16x256xf32>
    %129 = vector.shape_cast %128 : vector<1x16x256xf32> to vector<16x256xf32>
    %130 = vector.shape_cast %127 : vector<16x256xf32> to vector<1x16x256xf32>
    tpu.vector_store %arg5[%c0_15, %c0_16, %c0_17], %130 {strides = array<i32>} : memref<1x16x256xf32, #tpu.memory_space<vmem>>, vector<1x16x256xf32>,
    return
  }
  func.func @transform_0(%arg0: i32) -> (i32, i32, i32) {
    %c0_i32 = arith.constant 0 : i32
    %c0_i32_0 = arith.constant 0 : i32
    %c0_i32_1 = arith.constant 0 : i32
    return %arg0, %c0_i32, %c0_i32_0 : i32, i32, i32
  }
  func.func @transform_1(%arg0: i32) -> (i32, i32) {
    %c0_i32 = arith.constant 0 : i32
    %c0_i32_0 = arith.constant 0 : i32
    %c0_i32_1 = arith.constant 0 : i32
    return %c0_i32, %c0_i32_0 : i32, i32
  }
  func.func @transform_2(%arg0: i32) -> (i32, i32) {
    %c0_i32 = arith.constant 0 : i32
    %c0_i32_0 = arith.constant 0 : i32
    %c0_i32_1 = arith.constant 0 : i32
    return %c0_i32, %c0_i32_0 : i32, i32
  }
  func.func @transform_3(%arg0: i32) -> (i32, i32) {
    %c0_i32 = arith.constant 0 : i32
    %c0_i32_0 = arith.constant 0 : i32
    %c0_i32_1 = arith.constant 0 : i32
    return %c0_i32, %c0_i32_0 : i32, i32
  }
  func.func @transform_4(%arg0: i32) -> (i32, i32, i32) {
    %c0_i32 = arith.constant 0 : i32
    %c0_i32_0 = arith.constant 0 : i32
    %c0_i32_1 = arith.constant 0 : i32
    return %arg0, %c0_i32, %c0_i32_0 : i32, i32, i32
  }
}

</mosaic_0001>

<llo_original>
// kernel: tpu_custom_call.1
$region0: #{tpu_custom_call.1}
  #allocation0 [shape = 'u32[]', space=smem, size = 0x4, offset = 0x4, fixed_abs, tag = 'smem constant byte address 0x4 - core index']
  #allocation1 [shape = 'u32[144,128]{1,0:T(1,128)}', space=vmem, size = 0x12000, scoped, tag = 'internal scratch']
  %s0 = inlined_call_operand.hbm [shape: f32[1,8,256], index: 0, kind: input, shape index: {}]
  %s1 = inlined_call_operand.hbm [shape: f32[8,8], index: 1, kind: input, shape index: {}]
  %s2 = inlined_call_operand.hbm [shape: f32[8,11], index: 2, kind: input, shape index: {}]
  %s3 = inlined_call_operand.vmem [shape: f32[2,256], index: 3, kind: input, shape index: {}]
  %s4 = inlined_call_operand.hbm [shape: f32[1,16,256], index: 4, kind: output, shape index: {}]
  %s5 = sld [smem:[#allocation0]]
  $region38: #{tpu_custom_call.1} parent=0
    _
  %s7 = ssub.s32 1, %s5
  %s8 = scalar_select 0, %s7, %s5
  $region1: #{tpu_custom_call.1} parent=0
    #allocation2 [shape = 'u8[8192]{0}', space=vmem, size = 0x2000, scoped, tag = 'input window, operand 0, single buffered']
    #allocation3 [shape = 's32[1]{0}', space=sflag, size = 0x4, scoped, tag = 'scoped memory for tpu_custom_call.1']
    #allocation4 [shape = 's32[1]{0}', space=sflag, size = 0x4, scoped, tag = 'scoped memory for tpu_custom_call.1']
    #allocation5 [shape = 'u8[4096]{0}', space=vmem, size = 0x1000, scoped, tag = 'input window, operand 1, single buffered']
    #allocation6 [shape = 's32[1]{0}', space=sflag, size = 0x4, scoped, tag = 'scoped memory for tpu_custom_call.1']
    #allocation7 [shape = 'u8[4096]{0}', space=vmem, size = 0x1000, scoped, tag = 'input window, operand 2, single buffered']
    #allocation8 [shape = 'u8[16384]{0}', space=vmem, size = 0x4000, scoped, tag = 'output window, operand 0, single buffered']
    %9 = vsyncpa [#allocation3], 0
    %10 = vsyncpa [#allocation6], 0
    %11 = vsyncpa [#allocation4], 0
    // Predicated region
    $region2: #{tpu_custom_call.1} parent=1 // pred_check
      _
    $region3: #{tpu_custom_call.1} parent=1 // pred_check_branch
      %13 = sbr.rel (0) target = $region5
    $region4: #{tpu_custom_call.1} parent=1 // pred_region
      %s15 = ssub.s32 256, 256
      %16 = vsyncadd [#allocation3], %s15
      %s18 = sshll.u32 [#allocation2], 4
      %s19 = int_to_ptr.vmem [resolvable:$true] %s18
      %21 = dma.hbm_to_vmem [thread:$0]  %s0, 256, %s19, [#allocation3]
    $region5: #{tpu_custom_call.1} parent=1 // pred_fallthru
      _
    // Predicated region
    $region6: #{tpu_custom_call.1} parent=1 // pred_check
      _
    $region7: #{tpu_custom_call.1} parent=1 // pred_check_branch
      %23 = sbr.rel (0) target = $region9
    $region8: #{tpu_custom_call.1} parent=1 // pred_region
      %s25 = ssub.s32 128, 128
      %26 = vsyncadd [#allocation6], %s25
      %s28 = sshll.u32 [#allocation5], 4
      %s29 = int_to_ptr.vmem [resolvable:$true] %s28
      %31 = dma.hbm_to_vmem [thread:$0]  %s1, 128, %s29, [#allocation6]
    $region9: #{tpu_custom_call.1} parent=1 // pred_fallthru
      _
    // Predicated region
    $region10: #{tpu_custom_call.1} parent=1 // pred_check
      _
    $region11: #{tpu_custom_call.1} parent=1 // pred_check_branch
      %33 = sbr.rel (0) target = $region13
    $region12: #{tpu_custom_call.1} parent=1 // pred_region
      %s35 = ssub.s32 128, 128
      %36 = vsyncadd [#allocation6], %s35
      %s38 = sshll.u32 [#allocation7], 4
      %s39 = int_to_ptr.vmem [resolvable:$true] %s38
      %41 = dma.hbm_to_vmem [thread:$0]  %s2, 128, %s39, [#allocation6]
    $region13: #{tpu_custom_call.1} parent=1 // pred_fallthru
      _
    // Predicated region
    $region14: #{tpu_custom_call.1} parent=1 // pred_check
      _
    $region15: #{tpu_custom_call.1} parent=1 // pred_check_branch
      %43 = sbr.rel (0) target = $region17
    $region16: #{tpu_custom_call.1} parent=1 // pred_region
      _
    $region17: #{tpu_custom_call.1} parent=1 // pred_fallthru
      _
    // Predicated region
    $region18: #{tpu_custom_call.1} parent=1 // pred_check
      _
    $region19: #{tpu_custom_call.1} parent=1 // pred_check_branch
      %45 = sbr.rel (0) target = $region21
    $region20: #{tpu_custom_call.1} parent=1 // pred_region
      %46 = dma.done [#allocation3], 256
    $region21: #{tpu_custom_call.1} parent=1 // pred_fallthru
      _
    // Predicated region
    $region22: #{tpu_custom_call.1} parent=1 // pred_check
      _
    $region23: #{tpu_custom_call.1} parent=1 // pred_check_branch
      %48 = sbr.rel (0) target = $region25
    $region24: #{tpu_custom_call.1} parent=1 // pred_region
      %49 = dma.done [#allocation6], 128
    $region25: #{tpu_custom_call.1} parent=1 // pred_fallthru
      _
    // Predicated region
    $region26: #{tpu_custom_call.1} parent=1 // pred_check
      _
    $region27: #{tpu_custom_call.1} parent=1 // pred_check_branch
      %51 = sbr.rel (0) target = $region29
    $region28: #{tpu_custom_call.1} parent=1 // pred_region
      %52 = dma.done [#allocation6], 128
    $region29: #{tpu_custom_call.1} parent=1 // pred_fallthru
      _
    %v53 = vld [vmem:[#allocation2] sm:$0xff]
    %v54 = vld [vmem:[#allocation2 + $0x8] sm:$0xff]
    %v55 = vld [vmem:[#allocation5] sm:$0xff]
    %v56 = vld [vmem:[#allocation7] sm:$0xff]
    %58 = vset.pattern.permute.xlu0 0
    %59 = vperm.xlu0 %58, %v55
    %v60 = vpop.permute.xlu0 %59
    %v62 = vlaneseq
    %v63 = vshrl.u32 %v62, 7
    %v64 = vsub.s32 0, %v63
    %v65 = vrot.slane %v53, %v64
    %v66 = vlaneseq
    %v67 = vshrl.u32 %v66, 7
    %v68 = vsub.s32 0, %v67
    %v69 = vrot.slane %v54, %v68
    %v70 = vmul.f32 %v60, %v65
    %v71 = vmul.f32 %v60, %v69
    %72 = vset.pattern.permute.xlu0 1
    %73 = vperm.xlu0 %72, %v55
    %v74 = vpop.permute.xlu0 %73
    %v76 = vlaneseq
    %v77 = vshrl.u32 %v76, 7
    %v78 = vsub.s32 1, %v77
    %v79 = vrot.slane %v53, %v78
    %v80 = vlaneseq
    %v81 = vshrl.u32 %v80, 7
    %v82 = vsub.s32 1, %v81
    %v83 = vrot.slane %v54, %v82
    %v84 = vmul.f32 %v74, %v79
    %v85 = vmul.f32 %v74, %v83
    %v86 = vadd.f32 %v70, %v84
    %v87 = vadd.f32 %v71, %v85
    %88 = vset.pattern.permute.xlu0 2
    %89 = vperm.xlu0 %88, %v55
    %v90 = vpop.permute.xlu0 %89
    %v92 = vlaneseq
    %v93 = vshrl.u32 %v92, 7
    %v94 = vsub.s32 2, %v93
    %v95 = vrot.slane %v53, %v94
    %v96 = vlaneseq
    %v97 = vshrl.u32 %v96, 7
    %v98 = vsub.s32 2, %v97
    %v99 = vrot.slane %v54, %v98
    %v100 = vmul.f32 %v90, %v95
    %v101 = vmul.f32 %v90, %v99
    %v102 = vadd.f32 %v86, %v100
    %v103 = vadd.f32 %v87, %v101
    %104 = vset.pattern.permute.xlu0 3
    %105 = vperm.xlu0 %104, %v55
    %v106 = vpop.permute.xlu0 %105
    %v108 = vlaneseq
    %v109 = vshrl.u32 %v108, 7
    %v110 = vsub.s32 3, %v109
    %v111 = vrot.slane %v53, %v110
    %v112 = vlaneseq
    %v113 = vshrl.u32 %v112, 7
    %v114 = vsub.s32 3, %v113
    %v115 = vrot.slane %v54, %v114
    %v116 = vmul.f32 %v106, %v111
    %v117 = vmul.f32 %v106, %v115
    %v118 = vadd.f32 %v102, %v116
    %v119 = vadd.f32 %v103, %v117
    %120 = vset.pattern.permute.xlu0 4
    %121 = vperm.xlu0 %120, %v55
    %v122 = vpop.permute.xlu0 %121
    %v124 = vlaneseq
    %v125 = vshrl.u32 %v124, 7
    %v126 = vsub.s32 4, %v125
    %v127 = vrot.slane %v53, %v126
    %v128 = vlaneseq
    %v129 = vshrl.u32 %v128, 7
    %v130 = vsub.s32 4, %v129
    %v131 = vrot.slane %v54, %v130
    %v132 = vmul.f32 %v122, %v127
    %v133 = vmul.f32 %v122, %v131
    %v134 = vadd.f32 %v118, %v132
    %v135 = vadd.f32 %v119, %v133
    %136 = vset.pattern.permute.xlu0 5
    %137 = vperm.xlu0 %136, %v55
    %v138 = vpop.permute.xlu0 %137
    %v140 = vlaneseq
    %v141 = vshrl.u32 %v140, 7
    %v142 = vsub.s32 5, %v141
    %v143 = vrot.slane %v53, %v142
    %v144 = vlaneseq
    %v145 = vshrl.u32 %v144, 7
    %v146 = vsub.s32 5, %v145
    %v147 = vrot.slane %v54, %v146
    %v148 = vmul.f32 %v138, %v143
    %v149 = vmul.f32 %v138, %v147
    %v150 = vadd.f32 %v134, %v148
    %v151 = vadd.f32 %v135, %v149
    %152 = vset.pattern.permute.xlu0 6
    %153 = vperm.xlu0 %152, %v55
    %v154 = vpop.permute.xlu0 %153
    %v156 = vlaneseq
    %v157 = vshrl.u32 %v156, 7
    %v158 = vsub.s32 6, %v157
    %v159 = vrot.slane %v53, %v158
    %v160 = vlaneseq
    %v161 = vshrl.u32 %v160, 7
    %v162 = vsub.s32 6, %v161
    %v163 = vrot.slane %v54, %v162
    %v164 = vmul.f32 %v154, %v159
    %v165 = vmul.f32 %v154, %v163
    %v166 = vadd.f32 %v150, %v164
    %v167 = vadd.f32 %v151, %v165
    %168 = vset.pattern.permute.xlu0 7
    %169 = vperm.xlu0 %168, %v55
    %v170 = vpop.permute.xlu0 %169
    %v172 = vlaneseq
    %v173 = vshrl.u32 %v172, 7
    %v174 = vsub.s32 7, %v173
    %v175 = vrot.slane %v53, %v174
    %v176 = vlaneseq
    %v177 = vshrl.u32 %v176, 7
    %v178 = vsub.s32 7, %v177
    %v179 = vrot.slane %v54, %v178
    %v180 = vmul.f32 %v170, %v175
    %v181 = vmul.f32 %v170, %v179
    %v182 = vadd.f32 %v166, %v180
    %v183 = vadd.f32 %v167, %v181
    %185 = vset.pattern.permute.xlu0 0
    %186 = vperm.xlu0 %185, %v56
    %v187 = vpop.permute.xlu0 %186
    %v189 = vadd.f32 %v182, %v187
    %v190 = vadd.f32 %v183, %v187
    %v191 = vmax.f32 %v189, 0.0
    %v192 = vmax.f32 %v190, 0.0
    %s193 = scalar_lea.vmem %s3, 1
    %v194 = vld [vmem:[%s193] ss:$2 sm:$0x3]
    %v196 = vlaneseq
    %v197 = vshrl.u32 %v196, 7
    %v198 = vsub.s32 0, %v197
    %v199 = vrot.slane %v194, %v198
    %v200 = vlaneseq
    %v201 = vshrl.u32 %v200, 7
    %v202 = vsub.s32 1, %v201
    %v203 = vrot.slane %v194, %v202
    %v206 = vmul.f32 %v191, %v199
    %v207 = vmul.f32 %v192, %v203
    %v208 = vld [vmem:[%s3] ss:$2 sm:$0x3]
    %v210 = vlaneseq
    %v211 = vshrl.u32 %v210, 7
    %v212 = vsub.s32 0, %v211
    %v213 = vrot.slane %v208, %v212
    %v214 = vlaneseq
    %v215 = vshrl.u32 %v214, 7
    %v216 = vsub.s32 1, %v215
    %v217 = vrot.slane %v208, %v216
    %v220 = vmul.f32 %v191, %v213
    %v221 = vmul.f32 %v192, %v217
    %v222 = vlaneseq
    %v223 = vand.u32 %v222, 127
    %v224 = vadd.s32 %v223, 128
    %vm225 = vcmp.ge.s32.totalorder %v223, 16
    %vm226 = vcmp.ge.s32.totalorder %v224, 16
    %v227 = vsel %vm225, 1, 0
    %v228 = vsel %vm226, 1, 0
    %v229 = vcvt.s32.f32 %v227
    %v230 = vcvt.s32.f32 %v228
    %vm231 = vcmp.lt.s32.totalorder %v223, 240
    %vm232 = vcmp.lt.s32.totalorder %v224, 240
    %v233 = vsel %vm231, 1, 0
    %v234 = vsel %vm232, 1, 0
    %v235 = vcvt.s32.f32 %v233
    %v236 = vcvt.s32.f32 %v234
    %237 = vrot.lane.b32.xlu0 %v206, 1
    %v238 = vpop.permute.xlu0 %237
    %239 = vrot.lane.b32.xlu0 %v207, 1
    %v240 = vpop.permute.xlu0 %239
    %vm241 = vcmp.lt.s32.totalorder %v223, 1
    %v242 = vsel %vm241, %v238, %v240
    %v243 = vsel %vm241, %v240, %v238
    %244 = vset.pattern.permute.xlu0 4
    %245 = vperm.xlu0 %244, %v56
    %v246 = vpop.permute.xlu0 %245
    %v248 = vmul.f32 %v246, %v243
    %v249 = vmul.f32 %v246, %v242
    %250 = vset.pattern.permute.xlu0 5
    %251 = vperm.xlu0 %250, %v56
    %v252 = vpop.permute.xlu0 %251
    %v254 = vmul.f32 %v252, %v191
    %v255 = vmul.f32 %v252, %v192
    %v256 = vadd.f32 %v248, %v254
    %v257 = vadd.f32 %v249, %v255
    %258 = vrot.lane.b32.xlu0 %v220, 127
    %v259 = vpop.permute.xlu0 %258
    %260 = vrot.lane.b32.xlu0 %v221, 127
    %v261 = vpop.permute.xlu0 %260
    %vm262 = vcmp.lt.s32.totalorder %v223, 127
    %v263 = vsel %vm262, %v259, %v261
    %v264 = vsel %vm262, %v261, %v259
    %265 = vset.pattern.permute.xlu0 6
    %266 = vperm.xlu0 %265, %v56
    %v267 = vpop.permute.xlu0 %266
    %v269 = vmul.f32 %v267, %v263
    %v270 = vmul.f32 %v267, %v264
    %v271 = vadd.f32 %v256, %v269
    %v272 = vadd.f32 %v257, %v270
    %273 = vrot.lane.b32.xlu0 %v206, 17
    %v274 = vpop.permute.xlu0 %273
    %275 = vrot.lane.b32.xlu0 %v207, 17
    %v276 = vpop.permute.xlu0 %275
    %vm277 = vcmp.lt.s32.totalorder %v223, 17
    %v278 = vsel %vm277, %v274, %v276
    %v279 = vsel %vm277, %v276, %v274
    %280 = vset.pattern.permute.xlu0 1
    %281 = vperm.xlu0 %280, %v56
    %v282 = vpop.permute.xlu0 %281
    %v284 = vmul.f32 %v282, %v279
    %v285 = vmul.f32 %v282, %v278
    %286 = vrot.lane.b32.xlu0 %v191, 16
    %v287 = vpop.permute.xlu0 %286
    %288 = vrot.lane.b32.xlu0 %v192, 16
    %v289 = vpop.permute.xlu0 %288
    %vm290 = vcmp.lt.s32.totalorder %v223, 16
    %v291 = vsel %vm290, %v287, %v289
    %v292 = vsel %vm290, %v289, %v287
    %293 = vset.pattern.permute.xlu0 2
    %294 = vperm.xlu0 %293, %v56
    %v295 = vpop.permute.xlu0 %294
    %v297 = vmul.f32 %v295, %v292
    %v298 = vmul.f32 %v295, %v291
    %v299 = vadd.f32 %v284, %v297
    %v300 = vadd.f32 %v285, %v298
    %301 = vrot.lane.b32.xlu0 %v220, 15
    %v302 = vpop.permute.xlu0 %301
    %303 = vrot.lane.b32.xlu0 %v221, 15
    %v304 = vpop.permute.xlu0 %303
    %vm305 = vcmp.lt.s32.totalorder %v223, 15
    %v306 = vsel %vm305, %v302, %v304
    %v307 = vsel %vm305, %v304, %v302
    %308 = vset.pattern.permute.xlu0 3
    %309 = vperm.xlu0 %308, %v56
    %v310 = vpop.permute.xlu0 %309
    %v312 = vmul.f32 %v310, %v307
    %v313 = vmul.f32 %v310, %v306
    %v314 = vadd.f32 %v299, %v312
    %v315 = vadd.f32 %v300, %v313
    %316 = vrot.lane.b32.xlu0 %v206, 113
    %v317 = vpop.permute.xlu0 %316
    %318 = vrot.lane.b32.xlu0 %v207, 113
    %v319 = vpop.permute.xlu0 %318
    %vm320 = vcmp.lt.s32.totalorder %v223, 113
    %v321 = vsel %vm320, %v317, %v319
    %v322 = vsel %vm320, %v319, %v317
    %323 = vset.pattern.permute.xlu0 7
    %324 = vperm.xlu0 %323, %v56
    %v325 = vpop.permute.xlu0 %324
    %v327 = vmul.f32 %v325, %v321
    %v328 = vmul.f32 %v325, %v322
    %329 = vrot.lane.b32.xlu0 %v191, 112
    %v330 = vpop.permute.xlu0 %329
    %331 = vrot.lane.b32.xlu0 %v192, 112
    %v332 = vpop.permute.xlu0 %331
    %vm333 = vcmp.lt.s32.totalorder %v223, 112
    %v334 = vsel %vm333, %v330, %v332
    %v335 = vsel %vm333, %v332, %v330
    %336 = vset.pattern.permute.xlu0 8
    %337 = vperm.xlu0 %336, %v56
    %v338 = vpop.permute.xlu0 %337
    %v340 = vmul.f32 %v338, %v334
    %v341 = vmul.f32 %v338, %v335
    %v342 = vadd.f32 %v327, %v340
    %v343 = vadd.f32 %v328, %v341
    %344 = vrot.lane.b32.xlu0 %v220, 111
    %v345 = vpop.permute.xlu0 %344
    %346 = vrot.lane.b32.xlu0 %v221, 111
    %v347 = vpop.permute.xlu0 %346
    %vm348 = vcmp.lt.s32.totalorder %v223, 111
    %v349 = vsel %vm348, %v345, %v347
    %v350 = vsel %vm348, %v347, %v345
    %351 = vset.pattern.permute.xlu0 9
    %352 = vperm.xlu0 %351, %v56
    %v353 = vpop.permute.xlu0 %352
    %v355 = vmul.f32 %v353, %v349
    %v356 = vmul.f32 %v353, %v350
    %v357 = vadd.f32 %v342, %v355
    %v358 = vadd.f32 %v343, %v356
    %v359 = vmul.f32 %v229, %v314
    %v360 = vmul.f32 %v230, %v315
    %v361 = vadd.f32 %v271, %v359
    %v362 = vadd.f32 %v272, %v360
    %v363 = vmul.f32 %v235, %v357
    %v364 = vmul.f32 %v236, %v358
    %v365 = vadd.f32 %v361, %v363
    %v366 = vadd.f32 %v362, %v364
    %367 = vset.pattern.permute.xlu0 10
    %368 = vperm.xlu0 %367, %v56
    %v369 = vpop.permute.xlu0 %368
    %v371 = vadd.f32 %v365, %v369
    %v372 = vadd.f32 %v366, %v369
    %v373 = vmax.f32 %v371, 0.0
    %v374 = vmax.f32 %v372, 0.0
    %v377 = vrot.slane %v373, 4
    %v378 = vrot.slane %v374, 4
    %v383 = vrot.slane %v191, 4
    %v384 = vrot.slane %v192, 4
    %vm387 = vcmask 1043456
    %v388 = vsel %vm387, %v191, %v377
    %v389 = vsel %vm387, %v192, %v378
    %v390 = vsel %vm387, %v383, %v373
    %v391 = vsel %vm387, %v384, %v374
    %392 = vst [vmem:[#allocation8] sm:$0xff] %v388
    %393 = vst [vmem:[#allocation8 + $0x8] sm:$0xff] %v389
    %394 = vst [vmem:[#allocation8 + $0x10] sm:$0xff] %v390
    %395 = vst [vmem:[#allocation8 + $0x18] sm:$0xff] %v391
    // Predicated region
    $region30: #{tpu_custom_call.1} parent=1 // pred_check
      _
    $region31: #{tpu_custom_call.1} parent=1 // pred_check_branch
      %397 = sbr.rel (0) target = $region33
    $region32: #{tpu_custom_call.1} parent=1 // pred_region
      %s399 = ssub.s32 512, 512
      %400 = vsyncadd [#allocation4], %s399
      %s401 = sshll.u32 [#allocation8], 4
      %s402 = int_to_ptr.vmem [resolvable:$true] %s401
      %407 = dma.vmem_to_hbm [thread:$0]  %s402, 512, %s4, [#allocation4], 256, 256, 16
    $region33: #{tpu_custom_call.1} parent=1 // pred_fallthru
      _
    // Predicated region
    $region34: #{tpu_custom_call.1} parent=1 // pred_check
      _
    $region35: #{tpu_custom_call.1} parent=1 // pred_check_branch
      %409 = sbr.rel (0) target = $region37
    $region36: #{tpu_custom_call.1} parent=1 // pred_region
      %410 = dma.done [#allocation4], 512
    $region37: #{tpu_custom_call.1} parent=1 // pred_fallthru
      _
    %411 = vsyncpa [#allocation3], 1
    %412 = vsyncpa [#allocation6], 1
    %413 = vsyncpa [#allocation4], 1

</llo_original>
